<compile_context>
chip_gen: v7x
topology: tpu7x:2x2x1
jax: 0.10.0
libtpu: 0.0.40
codegen_flags: <defaults>
</compile_context>

<pallas_src>
import functools

import jax
import jax.numpy as jnp
from jax.experimental import pallas as pl
from jax.experimental.pallas import tpu as pltpu


def _multitask_loss_kernel(losses_ref, weights_ref, out_ref, *, bounded, bound_param):
    """losses_ref, weights_ref: (1, N) f32 in VMEM; out_ref: (1, 1) f32 in SMEM."""
    w = weights_ref[...]          # (1, N)
    losses = losses_ref[...]      # (1, N)
    sq = w * w

    if bounded:
        weight = sq + bound_param
        reg = sq + bound_param
    else:
        weight = sq
        reg = sq + 1.0

    per_loss = 0.5 * (losses / weight) + jnp.log(reg)   # (1, N)
    out_ref[0, 0] = jnp.sum(per_loss)                   # scalar -> SMEM


def multitask_loss(losses, weights, *, bound_param: float = 0.0):
    """JAX/Pallas equivalent of MultiTaskLoss.forward.

    Args:
      losses:  (num_losses,) float array of per-task losses (preferred), or a
               list/tuple of scalar losses (accepted for PyTorch-API parity).
      weights: (num_losses,) float32 learned weights.
      bound_param: static Python float, same semantics as the module ctor arg.

    Returns:
      scalar float32 combined loss.
    """
    if not isinstance(bound_param, (int, float)):
        raise TypeError("bound_param must be a static Python float, not a traced value")

    num_losses = weights.shape[0]

    if isinstance(losses, (list, tuple)):
        if len(losses) != num_losses:
            raise ValueError(f"Expected {num_losses} losses, got {len(losses)}")
        losses_arr = jnp.stack([jnp.asarray(l, jnp.float32) for l in losses])
    else:
        losses_arr = jnp.asarray(losses, jnp.float32)
        if losses_arr.shape != (num_losses,):
            raise ValueError(f"Expected losses of shape ({num_losses},), got {losses_arr.shape}")

    bounded = bound_param > 1e-6
    bound_sq = float(bound_param) ** 2

    losses_row = losses_arr.reshape(1, num_losses)
    weights_row = weights.astype(jnp.float32).reshape(1, num_losses)

    kernel = functools.partial(
        _multitask_loss_kernel, bounded=bounded, bound_param=bound_sq)

    out = pl.pallas_call(
        kernel,
        out_shape=jax.ShapeDtypeStruct((1, 1), jnp.float32),
        in_specs=[
            pl.BlockSpec(memory_space=pltpu.MemorySpace.VMEM),
            pl.BlockSpec(memory_space=pltpu.MemorySpace.VMEM),
        ],
        out_specs=pl.BlockSpec(memory_space=pltpu.MemorySpace.SMEM),
    )(losses_row, weights_row)

    return out[0, 0]


def multitask_loss_ref(losses, weights, *, bound_param: float = 0.0):
    """Pure-JAX reference mirroring the PyTorch forward exactly."""
    bounded = bound_param > 1e-6
    bound_sq = float(bound_param) ** 2
    sq = jnp.square(weights.astype(jnp.float32))
    total = jnp.float32(0.0)
    for i in range(weights.shape[0]):
        if bounded:
            weight = sq[i] + bound_sq
            reg = sq[i] + bound_sq
        else:
            weight = sq[i]
            reg = sq[i] + 1.0
        total = total + 0.5 * (jnp.asarray(losses[i], jnp.float32) / weight) + jnp.log(reg)
    return total


if __name__ == "__main__":
    num_losses = 4
    key = jax.random.PRNGKey(0)

    # Deterministic example per-task losses (e.g. scalars from 4 task heads),
    # already stacked into a single (num_losses,) array (preferred input form).
    raw_losses = jax.random.uniform(
        key, (num_losses,), dtype=jnp.float32, minval=0.1, maxval=2.0)

    # Parameter init matches the module: weights = ones(num_losses).
    weights = jnp.ones((num_losses,), dtype=jnp.float32)

    # Unbounded case (bound_param = 0.0, same as default ctor).
    out = multitask_loss(raw_losses, weights, bound_param=0.0)
    out = jax.block_until_ready(out)
    ref = multitask_loss_ref(raw_losses, weights, bound_param=0.0)
    assert jnp.allclose(out, ref, rtol=1e-5, atol=1e-5), (out, ref)

    # Bounded case, exercising the other branch.
    out_b = multitask_loss(raw_losses, weights, bound_param=0.01)
    out_b = jax.block_until_ready(out_b)
    ref_b = multitask_loss_ref(raw_losses, weights, bound_param=0.01)
    assert jnp.allclose(out_b, ref_b, rtol=1e-5, atol=1e-5), (out_b, ref_b)

    # List-of-scalars API (PyTorch parity) still works.
    out_l = multitask_loss([raw_losses[i] for i in range(num_losses)],
                           weights, bound_param=0.0)
    out_l = jax.block_until_ready(out_l)
    assert jnp.allclose(out_l, ref, rtol=1e-5, atol=1e-5), (out_l, ref)

    print("KERNEL_OK")
</pallas_src>

<mosaic_0001>
module attributes {stable_mosaic.version = 11 : i64} {
  func.func @_multitask_loss_kernel(%arg0: memref<1x4xf32, #tpu.memory_space<vmem>>, %arg1: memref<1x4xf32, #tpu.memory_space<vmem>>, %arg2: memref<1x1xf32, #tpu.memory_space<smem>>) attributes {dimension_semantics = [], scalar_prefetch = 0 : i64, scratch_operands = 0 : i64, tpu.core_type = #tpu.core_type<tc>} {
    %c0 = arith.constant 0 : index
    %c0_0 = arith.constant 0 : index
    %0 = vector.load %arg1[%c0, %c0_0] : memref<1x4xf32, #tpu.memory_space<vmem>>, vector<1x4xf32>
    %c0_1 = arith.constant 0 : index
    %c0_2 = arith.constant 0 : index
    %1 = vector.load %arg0[%c0_1, %c0_2] : memref<1x4xf32, #tpu.memory_space<vmem>>, vector<1x4xf32>
    %2 = arith.mulf %0, %0 : vector<1x4xf32>
    %cst = arith.constant 1.000000e+00 : f32
    %3 = vector.broadcast %cst : f32 to vector<1x4xf32>
    %4 = arith.addf %2, %3 : vector<1x4xf32>
    %5 = arith.divf %1, %2 : vector<1x4xf32>
    %cst_3 = arith.constant 5.000000e-01 : f32
    %6 = vector.broadcast %cst_3 : f32 to vector<1x4xf32>
    %7 = arith.mulf %6, %5 : vector<1x4xf32>
    %8 = math.log %4 : vector<1x4xf32>
    %9 = arith.addf %7, %8 : vector<1x4xf32>
    %10 = vector.shape_cast %9 : vector<1x4xf32> to vector<1x1x4xf32>
    %cst_4 = arith.constant dense<0.000000e+00> : vector<1xf32>
    %11 = vector.multi_reduction <add>, %10, %cst_4 [1, 2] : vector<1x1x4xf32> to vector<1xf32>
    %12 = vector.shape_cast %11 : vector<1xf32> to vector<1x1x1xf32>
    %13 = vector.extract %12[0, 0, 0] : f32 from vector<1x1x1xf32>
    %c0_5 = arith.constant 0 : index
    %c0_6 = arith.constant 0 : index
    %14 = memref.load %arg2[%c0_5, %c0_6] : memref<1x1xf32, #tpu.memory_space<smem>>
    memref.store %13, %arg2[%c0_5, %c0_6] : memref<1x1xf32, #tpu.memory_space<smem>>
    return
  }
}

</mosaic_0001>

<llo_original>
// kernel: tpu_custom_call.1
$region0: #{tpu_custom_call.1}
  #allocation0 [shape = 'u32[]', space=smem, size = 0x4, offset = 0x4, fixed_abs, tag = 'smem constant byte address 0x4 - core index']
  #allocation1 [shape = 'u32[144,128]{1,0:T(1,128)}', space=vmem, size = 0x12000, scoped, tag = 'internal scratch']
  %s0 = inlined_call_operand.hbm [shape: f32[1,4], index: 0, kind: input, shape index: {}]
  %s1 = inlined_call_operand.vmem [shape: f32[1,4], index: 1, kind: input, shape index: {}]
  %s2 = inlined_call_operand.hbm [shape: f32[1,1], index: 2, kind: output, shape index: {}]
  %s3 = sld [smem:[#allocation0]]
  $region22: #{tpu_custom_call.1} parent=0
    _
  %s5 = ssub.s32 1, %s3
  %s6 = scalar_select 0, %s5, %s3
  $region1: #{tpu_custom_call.1} parent=0
    #allocation2 [shape = 'u8[512]{0}', space=vmem, size = 0x400, scoped, tag = 'input window, operand 0, single buffered']
    #allocation3 [shape = 's32[1]{0}', space=sflag, size = 0x4, scoped, tag = 'scoped memory for tpu_custom_call.1']
    #allocation4 [shape = 's32[1]{0}', space=sflag, size = 0x4, scoped, tag = 'scoped memory for tpu_custom_call.1']
    #allocation5 [shape = 'u8[512]{0}', space=smem, size = 0x200, scoped, tag = 'output window, operand 0, single buffered']
    %7 = vsyncpa [#allocation3], 0
    %8 = vsyncpa [#allocation4], 0
    // Predicated region
    $region2: #{tpu_custom_call.1} parent=1 // pred_check
      _
    $region3: #{tpu_custom_call.1} parent=1 // pred_check_branch
      %10 = sbr.rel (0) target = $region5
    $region4: #{tpu_custom_call.1} parent=1 // pred_region
      %s12 = ssub.s32 16, 16
      %13 = vsyncadd [#allocation3], %s12
      %s15 = sshll.u32 [#allocation2], 4
      %s16 = int_to_ptr.vmem [resolvable:$true] %s15
      %18 = dma.hbm_to_vmem [thread:$0]  %s0, 16, %s16, [#allocation3]
    $region5: #{tpu_custom_call.1} parent=1 // pred_fallthru
      _
    // Predicated region
    $region6: #{tpu_custom_call.1} parent=1 // pred_check
      _
    $region7: #{tpu_custom_call.1} parent=1 // pred_check_branch
      %20 = sbr.rel (0) target = $region9
    $region8: #{tpu_custom_call.1} parent=1 // pred_region
      _
    $region9: #{tpu_custom_call.1} parent=1 // pred_fallthru
      _
    // Predicated region
    $region10: #{tpu_custom_call.1} parent=1 // pred_check
      _
    $region11: #{tpu_custom_call.1} parent=1 // pred_check_branch
      %22 = sbr.rel (0) target = $region13
    $region12: #{tpu_custom_call.1} parent=1 // pred_region
      %23 = dma.done [#allocation3], 16
    $region13: #{tpu_custom_call.1} parent=1 // pred_fallthru
      _
    %v24 = vld [vmem:[%s1] sm:$0x1]
    %v25 = vld [vmem:[#allocation2] sm:$0x1]
    %v26 = vmul.f32 %v24, %v24
    %v27 = vadd.f32 %v26, 1.0
    %v28 = vrcp.pop %v26
    %v29 = vmul.f32 %v25, %v28
    %v30 = vmul.f32 %v29, 0.5
    %v31 = vlog2.pop %v27
    %v32 = vmul.f32 %v31, 0.6931472
    %v33 = vadd.f32 %v30, %v32
    %vm34 = vcmask 24576
    %v35 = vsel %vm34, %v33, 0.0
    %36 = vadd.xlane.f32.xlu0 %v35
    %v37 = vpop.xlane.xlu0 %36
    %v38 = vrot.slane %v37, 4
    %v39 = vadd.f32 %v37, %v38
    %v40 = vrot.slane %v39, 2
    %v41 = vadd.f32 %v39, %v40
    %v42 = vrot.slane %v41, 1
    %v43 = vadd.f32 %v41, %v42
    %s44 = vtos %v43
    %s45 = scalar_lea.smem [#allocation5], 0
    %46 = sst [smem:[%s45]] %s44
    // Predicated region
    $region14: #{tpu_custom_call.1} parent=1 // pred_check
      _
    $region15: #{tpu_custom_call.1} parent=1 // pred_check_branch
      %48 = sbr.rel (0) target = $region17
    $region16: #{tpu_custom_call.1} parent=1 // pred_region
      %s50 = ssub.s32 16, 16
      %51 = vsyncadd [#allocation4], %s50
      %54 = dma.smem_to_hbm [#allocation5], 16, %s2, [#allocation4]
    $region17: #{tpu_custom_call.1} parent=1 // pred_fallthru
      _
    // Predicated region
    $region18: #{tpu_custom_call.1} parent=1 // pred_check
      _
    $region19: #{tpu_custom_call.1} parent=1 // pred_check_branch
      %56 = sbr.rel (0) target = $region21
    $region20: #{tpu_custom_call.1} parent=1 // pred_region
      %57 = dma.done [#allocation4], 16
    $region21: #{tpu_custom_call.1} parent=1 // pred_fallthru
      _
    %58 = sfence
    %59 = vsyncpa [#allocation3], 1
    %60 = vsyncpa [#allocation4], 1

</llo_original>
